<compile_context>
chip_gen: v7x
topology: tpu7x:2x2x1
jax: 0.10.0
libtpu: 0.0.40
codegen_flags: <defaults>
</compile_context>

<pallas_src>
import functools

import jax
import jax.numpy as jnp
from jax.experimental import pallas as pl
from jax.experimental.pallas import tpu as pltpu

LEAKY_SLOPE = 0.01  # PyTorch nn.LeakyReLU default negative_slope


def _round_up(n, m):
    return ((n + m - 1) // m) * m


def _leaky_relu(v):
    # For 0 < slope < 1, max(v, slope*v) == LeakyReLU(v): mul+max (2 VALU ops).
    return jnp.maximum(v, LEAKY_SLOPE * v)


def mapper_kernel(x_ref, w1_ref, b1_ref, w2_ref, b2_ref, o_ref):
    # Two MXU matmuls (bf16 operands, f32 accumulation) + VPU LeakyReLU, fused
    # in VMEM. Bias broadcast-adds ride free VPU slots next to the MXU work.
    h = jnp.dot(x_ref[...], w1_ref[...],
                preferred_element_type=jnp.float32) + b1_ref[...]
    # Cast the hidden activation to the compute (bf16) dtype right away: halves
    # the live (tb, hid) intermediate; second dot still accumulates in f32.
    h = _leaky_relu(h.astype(w2_ref.dtype))
    y = jnp.dot(h, w2_ref[...],
                preferred_element_type=jnp.float32) + b2_ref[...]
    o_ref[...] = _leaky_relu(y).astype(o_ref.dtype)


def _vmem_bytes(tb, in_f, hid, out_pad, op_bytes, out_bytes):
    """Rough per-step VMEM footprint (bytes) for the chosen batch tile."""
    x_tiles = 2 * tb * in_f * op_bytes          # double-buffered activation tile
    o_tiles = 2 * tb * out_pad * out_bytes      # double-buffered output tile
    weights = ((in_f * hid + hid * out_pad) * op_bytes
               + (hid + out_pad) * 4)           # single copy (Buffered(1))
    interm = tb * hid * (4 + op_bytes) + tb * out_pad * 4  # f32 h, bf16 h, f32 y
    return x_tiles + o_tiles + weights + interm


def _choose_tb(B, block_b, in_f, hid, out_pad, op_bytes, out_bytes, budget):
    if B <= 8:
        # Whole (tiny) batch as one block: block shape equals array dims, so the
        # (8,128) constraint does not apply.
        return B
    # Aim for >= 2 grid steps once there is real work, so ("parallel",) can
    # shard the batch across both v7x TensorCores; never exceed block_b.
    tb = min(block_b, _round_up(pl.cdiv(B, 2), 8))
    # Shrink the batch tile (keep a multiple of 8 sublanes) until it fits VMEM.
    while tb > 8 and _vmem_bytes(tb, in_f, hid, out_pad, op_bytes, out_bytes) > budget:
        tb = max(8, _round_up(tb // 2, 8))
    return tb


def mapper_forward(x, w1, b1, w2, b2, *, out_features=None, out_dtype=None,
                   block_b=512, vmem_budget_bytes=48 * 1024 * 1024):
    """x: [B, input_size] -> [B, out_features] (default out_dtype = weight dtype)."""
    B, in_f = x.shape
    hid = w1.shape[1]
    out_pad = w2.shape[1]          # already padded to a multiple of 128
    if out_features is None:
        out_features = out_pad
    if out_dtype is None:
        out_dtype = w1.dtype       # bf16 writeback halves output HBM traffic

    # Cast matmul operand x to the (bf16) weight dtype; biases stay f32.
    if x.dtype != w1.dtype:
        x = x.astype(w1.dtype)

    op_bytes = jnp.dtype(w1.dtype).itemsize
    out_bytes = jnp.dtype(out_dtype).itemsize

    tb = _choose_tb(B, block_b, in_f, hid, out_pad, op_bytes, out_bytes,
                    vmem_budget_bytes)

    # Pad the batch once so there is never a partial tail tile (no wasted
    # MXU/DMA work on garbage rows); padded rows are sliced off below.
    Bp = _round_up(B, tb)
    if Bp != B:
        x = jnp.pad(x, ((0, Bp - B), (0, 0)))
    grid = (Bp // tb,)

    vmem_bytes = _vmem_bytes(tb, in_f, hid, out_pad, op_bytes, out_bytes)
    vmem_limit = int(min(max(vmem_bytes + (4 << 20), 16 << 20), 64 << 20))

    cost = pl.CostEstimate(
        flops=2 * Bp * (in_f * hid + hid * out_pad),
        transcendentals=0,
        bytes_accessed=(Bp * in_f * op_bytes
                        + (in_f * hid + hid * out_pad) * op_bytes
                        + (hid + out_pad) * 4
                        + Bp * out_pad * out_bytes),
    )

    # Resident parameters: constant block index -> single-buffered in VMEM.
    resident = pl.Buffered(1)

    out = pl.pallas_call(
        mapper_kernel,
        out_shape=jax.ShapeDtypeStruct((Bp, out_pad), out_dtype),
        grid_spec=pltpu.PrefetchScalarGridSpec(
            num_scalar_prefetch=0,
            grid=grid,
            in_specs=[
                pl.BlockSpec((tb, in_f), lambda i: (i, 0)),      # x tile per step
                pl.BlockSpec((in_f, hid), lambda i: (0, 0), pipeline_mode=resident),
                pl.BlockSpec((1, hid), lambda i: (0, 0), pipeline_mode=resident),
                pl.BlockSpec((hid, out_pad), lambda i: (0, 0), pipeline_mode=resident),
                pl.BlockSpec((1, out_pad), lambda i: (0, 0), pipeline_mode=resident),
            ],
            out_specs=pl.BlockSpec((tb, out_pad), lambda i: (i, 0)),
        ),
        compiler_params=pltpu.CompilerParams(
            dimension_semantics=("parallel",),
            vmem_limit_bytes=vmem_limit),
        cost_estimate=cost,
    )(x, w1, b1, w2, b2)

    if Bp != B:
        out = out[:B]
    if out_features != out_pad:
        out = out[:, :out_features]
    return out


def make_params(key, input_size, token_length, output_n, dtype=jnp.float32):
    """Synthetic f32 params matching nn.Linear shapes (stored transposed).

    nn.Linear(input_size, hid) -> W1 [input_size, hid], b1 [1, hid]
    nn.Linear(hid, out)        -> W2 [hid, out],        b2 [1, out]
    """
    hid = token_length * output_n // 2
    out = token_length * output_n
    k1, k2, k3, k4 = jax.random.split(key, 4)
    w1 = (jax.random.normal(k1, (input_size, hid), dtype) * 0.05).astype(dtype)
    b1 = (jax.random.normal(k2, (1, hid), dtype) * 0.05).astype(dtype)
    w2 = (jax.random.normal(k3, (hid, out), dtype) * 0.05).astype(dtype)
    b2 = (jax.random.normal(k4, (1, out), dtype) * 0.05).astype(dtype)
    return w1, b1, w2, b2


def prepare_kernel_params(w1, b1, w2, b2, compute_dtype=jnp.bfloat16):
    """Pad hidden AND output dims up to multiples of 128 (zeros -> identical
    math, lane-dense MXU/stores) and cast matmul weights to the compute dtype
    (biases stay f32). in_f is intentionally NOT padded (no useful work)."""
    hid = w1.shape[1]
    out_f = w2.shape[1]
    hid_pad = _round_up(max(hid, 128), 128)
    out_pad = _round_up(max(out_f, 128), 128)
    if hid_pad != hid:
        w1 = jnp.pad(w1, ((0, 0), (0, hid_pad - hid)))   # extra output cols -> 0
        b1 = jnp.pad(b1, ((0, 0), (0, hid_pad - hid)))   # LeakyReLU(0) = 0
        w2 = jnp.pad(w2, ((0, hid_pad - hid), (0, 0)))   # zero rows contribute 0
    if out_pad != out_f:
        w2 = jnp.pad(w2, ((0, 0), (0, out_pad - out_f)))  # lane-dense output
        b2 = jnp.pad(b2, ((0, 0), (0, out_pad - out_f)))
    return (w1.astype(compute_dtype), b1.astype(jnp.float32),
            w2.astype(compute_dtype), b2.astype(jnp.float32))


def mapper_reference(x, w1, b1, w2, b2):
    h = jnp.where(x @ w1 + b1 >= 0, x @ w1 + b1, LEAKY_SLOPE * (x @ w1 + b1))
    y = h @ w2 + b2
    return jnp.where(y >= 0, y, LEAKY_SLOPE * y)


if __name__ == "__main__":
    # Shapes consistent with the module: Mapper(input_size=32, token_length=8,
    # output_n=16) -> hidden=64 (padded to 128), output=128; batch=2.
    # TODO(synk): at batch=2 this op is launch-overhead bound; batch many Mapper
    # calls into one launch (or use plain XLA) if the deployment batch stays tiny.
    input_size, token_length, output_n = 32, 8, 16
    batch = 2
    out_f = token_length * output_n

    key = jax.random.PRNGKey(0)
    kx, kp = jax.random.split(key)
    x = jax.random.normal(kx, (batch, input_size), jnp.float32)
    w1, b1, w2, b2 = make_params(kp, input_size, token_length, output_n)
    kw1, kb1, kw2, kb2 = prepare_kernel_params(w1, b1, w2, b2)

    fwd = jax.jit(functools.partial(
        mapper_forward, out_features=out_f, out_dtype=jnp.bfloat16, block_b=512))
    out = jax.block_until_ready(fwd(x, kw1, kb1, kw2, kb2))

    ref = mapper_reference(x, w1, b1, w2, b2)  # full-f32 reference
    assert out.shape == (batch, out_f), out.shape
    assert out.dtype == jnp.bfloat16, out.dtype
    # bf16 operands / bf16 hidden / bf16 writeback with f32 MXU accumulation
    # -> relaxed tolerance vs the f32 reference.
    assert jnp.allclose(out.astype(jnp.float32), ref, atol=1e-2, rtol=5e-2), \
        "mismatch vs reference"

    print("KERNEL_OK")
</pallas_src>

<mosaic_0001>
module attributes {stable_mosaic.version = 11 : i64} {
  func.func @mapper_kernel(%arg0: i32, %arg1: memref<2x32xbf16, #tpu.memory_space<vmem>>, %arg2: memref<32x128xbf16, #tpu.memory_space<vmem>>, %arg3: memref<1x128xf32, #tpu.memory_space<vmem>>, %arg4: memref<128x128xbf16, #tpu.memory_space<vmem>>, %arg5: memref<1x128xf32, #tpu.memory_space<vmem>>, %arg6: memref<2x128xbf16, #tpu.memory_space<vmem>>) attributes {dimension_semantics = [#tpu.dimension_semantics<parallel>], iteration_bounds = array<i64: 1>, scalar_prefetch = 0 : i64, scratch_operands = 0 : i64, tpu.core_type = #tpu.core_type<tc>, window_params = [{transform_indices = @transform_0, window_bounds = array<i64: 2, 32>}, {pipeline_mode = #tpu.pipeline_mode<synchronous>, transform_indices = @transform_1, window_bounds = array<i64: 32, 128>}, {pipeline_mode = #tpu.pipeline_mode<synchronous>, transform_indices = @transform_2, window_bounds = array<i64: 1, 128>}, {pipeline_mode = #tpu.pipeline_mode<synchronous>, transform_indices = @transform_3, window_bounds = array<i64: 128, 128>}, {pipeline_mode = #tpu.pipeline_mode<synchronous>, transform_indices = @transform_4, window_bounds = array<i64: 1, 128>}, {transform_indices = @transform_5, window_bounds = array<i64: 2, 128>}]} {
    %c0 = arith.constant 0 : index
    %c0_0 = arith.constant 0 : index
    %0 = vector.load %arg1[%c0, %c0_0] : memref<2x32xbf16, #tpu.memory_space<vmem>>, vector<2x32xbf16>
    %c0_1 = arith.constant 0 : index
    %c0_2 = arith.constant 0 : index
    %1 = vector.load %arg2[%c0_1, %c0_2] : memref<32x128xbf16, #tpu.memory_space<vmem>>, vector<32x128xbf16>
    %cst = arith.constant dense<0.000000e+00> : vector<2x128xf32>
    %2 = tpu.matmul %0, %1, %cst {dimension_numbers = #tpu.dot_dimension_numbers<[1], [0], [0], [1], [0, 0, 1, 1], [], []>} : vector<2x32xbf16>, vector<32x128xbf16>, vector<2x128xf32> -> vector<2x128xf32>
    %c0_3 = arith.constant 0 : index
    %c0_4 = arith.constant 0 : index
    %3 = vector.load %arg3[%c0_3, %c0_4] : memref<1x128xf32, #tpu.memory_space<vmem>>, vector<1x128xf32>
    %4 = vector.broadcast %3 : vector<1x128xf32> to vector<2x128xf32>
    %5 = arith.addf %2, %4 : vector<2x128xf32>
    %6 = arith.truncf %5 : vector<2x128xf32> to vector<2x128xbf16>
    %cst_5 = arith.constant 1.000980e-02 : bf16
    %7 = vector.broadcast %cst_5 : bf16 to vector<2x128xbf16>
    %8 = arith.mulf %7, %6 : vector<2x128xbf16>
    %9 = arith.maximumf %6, %8 : vector<2x128xbf16>
    %c0_6 = arith.constant 0 : index
    %c0_7 = arith.constant 0 : index
    %10 = vector.load %arg4[%c0_6, %c0_7] : memref<128x128xbf16, #tpu.memory_space<vmem>>, vector<128x128xbf16>
    %cst_8 = arith.constant dense<0.000000e+00> : vector<2x128xf32>
    %11 = tpu.matmul %9, %10, %cst_8 {dimension_numbers = #tpu.dot_dimension_numbers<[1], [0], [0], [1], [0, 0, 1, 1], [], []>} : vector<2x128xbf16>, vector<128x128xbf16>, vector<2x128xf32> -> vector<2x128xf32>
    %c0_9 = arith.constant 0 : index
    %c0_10 = arith.constant 0 : index
    %12 = vector.load %arg5[%c0_9, %c0_10] : memref<1x128xf32, #tpu.memory_space<vmem>>, vector<1x128xf32>
    %13 = vector.broadcast %12 : vector<1x128xf32> to vector<2x128xf32>
    %14 = arith.addf %11, %13 : vector<2x128xf32>
    %cst_11 = arith.constant 0.00999999977 : f32
    %15 = vector.broadcast %cst_11 : f32 to vector<2x128xf32>
    %16 = arith.mulf %15, %14 : vector<2x128xf32>
    %17 = arith.maximumf %14, %16 : vector<2x128xf32>
    %18 = arith.truncf %17 : vector<2x128xf32> to vector<2x128xbf16>
    %c0_12 = arith.constant 0 : index
    %c0_13 = arith.constant 0 : index
    %19 = vector.load %arg6[%c0_12, %c0_13] : memref<2x128xbf16, #tpu.memory_space<vmem>>, vector<2x128xbf16>
    tpu.vector_store %arg6[%c0_12, %c0_13], %18 {strides = array<i32>} : memref<2x128xbf16, #tpu.memory_space<vmem>>, vector<2x128xbf16>,
    return
  }
  func.func @transform_0(%arg0: i32) -> (i32, i32) {
    %c0_i32 = arith.constant 0 : i32
    %c0_i32_0 = arith.constant 0 : i32
    return %arg0, %c0_i32 : i32, i32
  }
  func.func @transform_1(%arg0: i32) -> (i32, i32) {
    %c0_i32 = arith.constant 0 : i32
    %c0_i32_0 = arith.constant 0 : i32
    %c0_i32_1 = arith.constant 0 : i32
    return %c0_i32, %c0_i32_0 : i32, i32
  }
  func.func @transform_2(%arg0: i32) -> (i32, i32) {
    %c0_i32 = arith.constant 0 : i32
    %c0_i32_0 = arith.constant 0 : i32
    %c0_i32_1 = arith.constant 0 : i32
    return %c0_i32, %c0_i32_0 : i32, i32
  }
  func.func @transform_3(%arg0: i32) -> (i32, i32) {
    %c0_i32 = arith.constant 0 : i32
    %c0_i32_0 = arith.constant 0 : i32
    %c0_i32_1 = arith.constant 0 : i32
    return %c0_i32, %c0_i32_0 : i32, i32
  }
  func.func @transform_4(%arg0: i32) -> (i32, i32) {
    %c0_i32 = arith.constant 0 : i32
    %c0_i32_0 = arith.constant 0 : i32
    %c0_i32_1 = arith.constant 0 : i32
    return %c0_i32, %c0_i32_0 : i32, i32
  }
  func.func @transform_5(%arg0: i32) -> (i32, i32) {
    %c0_i32 = arith.constant 0 : i32
    %c0_i32_0 = arith.constant 0 : i32
    return %arg0, %c0_i32 : i32, i32
  }
}

</mosaic_0001>

<llo_original>
// kernel: mapper_forward.1
$region0: #{mapper_forward.1}
  #allocation0 [shape = 'u32[]', space=smem, size = 0x4, offset = 0x4, fixed_abs, tag = 'smem constant byte address 0x4 - core index']
  #allocation1 [shape = 'u32[144,128]{1,0:T(1,128)}', space=vmem, size = 0x12000, scoped, tag = 'internal scratch']
  %s0 = inlined_call_operand.vmem [shape: bf16[2,32], index: 0, kind: input, shape index: {}]
  %s1 = inlined_call_operand.hbm [shape: bf16[32,128], index: 1, kind: input, shape index: {}]
  %s2 = inlined_call_operand.vmem [shape: f32[1,128], index: 2, kind: input, shape index: {}]
  %s3 = inlined_call_operand.hbm [shape: bf16[128,128], index: 3, kind: input, shape index: {}]
  %s4 = inlined_call_operand.vmem [shape: f32[1,128], index: 4, kind: input, shape index: {}]
  %s5 = inlined_call_operand.hbm [shape: bf16[2,128], index: 5, kind: output, shape index: {}]
  %s6 = sld [smem:[#allocation0]]
  $region38: #{mapper_forward.1} parent=0
    _
  %s8 = ssub.s32 1, %s6
  %s9 = scalar_select 0, %s8, %s6
  $region1: #{mapper_forward.1} parent=0
    #allocation2 [shape = 'u8[8192]{0}', space=vmem, size = 0x2000, scoped, tag = 'input window, operand 1, single buffered']
    #allocation3 [shape = 's32[1]{0}', space=sflag, size = 0x4, scoped, tag = 'scoped memory for mapper_forward.1']
    #allocation4 [shape = 's32[1]{0}', space=sflag, size = 0x4, scoped, tag = 'scoped memory for mapper_forward.1']
    #allocation5 [shape = 'u8[32768]{0}', space=vmem, size = 0x8000, scoped, tag = 'input window, operand 3, single buffered']
    #allocation6 [shape = 's32[1]{0}', space=sflag, size = 0x4, scoped, tag = 'scoped memory for mapper_forward.1']
    #allocation7 [shape = 'u8[512]{0}', space=vmem, size = 0x400, scoped, tag = 'output window, operand 0, single buffered']
    %10 = vsyncpa [#allocation3], 0
    %11 = vsyncpa [#allocation6], 0
    %12 = vsyncpa [#allocation4], 0
    // Predicated region
    $region2: #{mapper_forward.1} parent=1 // pred_check
      _
    $region3: #{mapper_forward.1} parent=1 // pred_check_branch
      %14 = sbr.rel (0) target = $region5
    $region4: #{mapper_forward.1} parent=1 // pred_region
      _
    $region5: #{mapper_forward.1} parent=1 // pred_fallthru
      _
    // Predicated region
    $region6: #{mapper_forward.1} parent=1 // pred_check
      _
    $region7: #{mapper_forward.1} parent=1 // pred_check_branch
      %16 = sbr.rel (0) target = $region9
    $region8: #{mapper_forward.1} parent=1 // pred_region
      %s18 = ssub.s32 256, 256
      %19 = vsyncadd [#allocation3], %s18
      %s20 = sshll.u32 [#allocation2], 4
      %s21 = int_to_ptr.vmem [resolvable:$true] %s20
      %26 = dma.hbm_to_vmem [thread:$0]  %s1, 256, %s21, [#allocation3], 64, 64, 4
    $region9: #{mapper_forward.1} parent=1 // pred_fallthru
      _
    // Predicated region
    $region10: #{mapper_forward.1} parent=1 // pred_check
      _
    $region11: #{mapper_forward.1} parent=1 // pred_check_branch
      %28 = sbr.rel (0) target = $region13
    $region12: #{mapper_forward.1} parent=1 // pred_region
      _
    $region13: #{mapper_forward.1} parent=1 // pred_fallthru
      _
    // Predicated region
    $region14: #{mapper_forward.1} parent=1 // pred_check
      _
    $region15: #{mapper_forward.1} parent=1 // pred_check_branch
      %30 = sbr.rel (0) target = $region17
    $region16: #{mapper_forward.1} parent=1 // pred_region
      %s32 = ssub.s32 1024, 1024
      %33 = vsyncadd [#allocation6], %s32
      %s34 = sshll.u32 [#allocation5], 4
      %s35 = int_to_ptr.vmem [resolvable:$true] %s34
      %40 = dma.hbm_to_vmem [thread:$0]  %s3, 1024, %s35, [#allocation6], 64, 64, 4
    $region17: #{mapper_forward.1} parent=1 // pred_fallthru
      _
    // Predicated region
    $region18: #{mapper_forward.1} parent=1 // pred_check
      _
    $region19: #{mapper_forward.1} parent=1 // pred_check_branch
      %42 = sbr.rel (0) target = $region21
    $region20: #{mapper_forward.1} parent=1 // pred_region
      _
    $region21: #{mapper_forward.1} parent=1 // pred_fallthru
      _
    // Predicated region
    $region22: #{mapper_forward.1} parent=1 // pred_check
      _
    $region23: #{mapper_forward.1} parent=1 // pred_check_branch
      %44 = sbr.rel (0) target = $region25
    $region24: #{mapper_forward.1} parent=1 // pred_region
      %45 = dma.done [#allocation3], 256
    $region25: #{mapper_forward.1} parent=1 // pred_fallthru
      _
    // Predicated region
    $region26: #{mapper_forward.1} parent=1 // pred_check
      _
    $region27: #{mapper_forward.1} parent=1 // pred_check_branch
      %47 = sbr.rel (0) target = $region29
    $region28: #{mapper_forward.1} parent=1 // pred_region
      %48 = dma.done [#allocation6], 1024
    $region29: #{mapper_forward.1} parent=1 // pred_fallthru
      _
    %v51 = vld [vmem:[%s0] sm:$0x1]
    %v52 = vld [vmem:[#allocation2] sm:$0xf]
    %v53 = vld [vmem:[#allocation2 + $0x4] sm:$0xf]
    %v54 = vld [vmem:[#allocation2 + $0x8] sm:$0xf]
    %v55 = vld [vmem:[#allocation2 + $0xc] sm:$0xf]
    %v56 = vld [vmem:[%s2] sm:$0x1]
    %v58 = vlaneseq
    %v59 = vshrl.u32 %v58, 7
    %v60 = vsub.s32 0, %v59
    %v61 = vrot.slane %v56, %v60
    %v67 = vunpack.c.l.b16 %v52
    %v68 = vunpack.c.l.b16 %v53
    %v69 = vunpack.c.l.b16 %v54
    %v70 = vunpack.c.l.b16 %v55
    %v71 = vpack.c.b16 %v68, %v67
    %v72 = vpack.c.b16 %v70, %v69
    %vm75 = vcmask 261120
    %v77 = vsel %vm75, %v51, 0
    %79 = vmatprep.subr.bf16.mxu0 0
    %80 = vmatpush1.bf16.msra.mxu0 %v71
    %81 = vmatprep.subr.bf16.mxu0 0
    %82 = vmatpush1.bf16.msra.mxu0 %v72
    %83 = vmatprep.subr.bf16.mxu0 0
    %84 = vmatpush1.bf16.msra.mxu0 0
    %85 = vmatprep.subr.bf16.mxu0 0
    %86 = vmatpush1.bf16.msra.mxu0 0
    %87 = vmatprep.subr.bf16.mxu0 0
    %88 = vmatpush1.bf16.msra.mxu0 0
    %89 = vmatprep.subr.bf16.mxu0 0
    %90 = vmatpush1.bf16.msra.mxu0 0
    %91 = vmatprep.subr.bf16.mxu0 0
    %92 = vmatpush1.bf16.msra.mxu0 0
    %93 = vmatprep.subr.bf16.mxu0 0
    %94 = vmatpush1.bf16.msra.mxu0 0
    %95 = vmatprep.subr.bf16.mxu0 0
    %96 = vmatpush1.bf16.msra.mxu0 0
    %97 = vmatprep.subr.bf16.mxu0 0
    %98 = vmatpush1.bf16.msra.mxu0 0
    %99 = vmatprep.subr.bf16.mxu0 0
    %100 = vmatpush1.bf16.msra.mxu0 0
    %101 = vmatprep.subr.bf16.mxu0 0
    %102 = vmatpush1.bf16.msra.mxu0 0
    %103 = vmatprep.subr.bf16.mxu0 0
    %104 = vmatpush1.bf16.msra.mxu0 0
    %105 = vmatprep.subr.bf16.mxu0 0
    %106 = vmatpush1.bf16.msra.mxu0 0
    %107 = vmatprep.subr.bf16.mxu0 0
    %108 = vmatpush1.bf16.msra.mxu0 0
    %109 = vmatprep.subr.bf16.mxu0 0
    %110 = vmatpush1.bf16.msra.mxu0 0
    %111 = vmatprep.mubr.bf16.mxu0 0
    %112 = vmatmul.mubr.bf16.gmra.mrb[0].mxu0 %v77
    %v113 = vpop.f32.mrb[0].mxu0
    %v114 = vadd.f32 %v61, %v113
    %v115 = vpop.f32.mrb[0].mxu0
    %v116 = vpop.f32.mrb[0].mxu0
    %v117 = vpop.f32.mrb[0].mxu0
    %118 = vdwg.mxu0
    %v119 = vpack.c.bf16 %v114, %v114
    %v120 = vmul.bf16 %v119, 1009007652
    %v121 = vmax.bf16 %v119, %v120
    %v122 = vld [vmem:[#allocation5] sm:$0xf]
    %v123 = vld [vmem:[#allocation5 + $0x4] sm:$0xf]
    %v124 = vld [vmem:[#allocation5 + $0x8] sm:$0xf]
    %v125 = vld [vmem:[#allocation5 + $0xc] sm:$0xf]
    %v126 = vld [vmem:[#allocation5 + $0x10] sm:$0xf]
    %v127 = vld [vmem:[#allocation5 + $0x14] sm:$0xf]
    %v128 = vld [vmem:[#allocation5 + $0x18] sm:$0xf]
    %v129 = vld [vmem:[#allocation5 + $0x1c] sm:$0xf]
    %v130 = vld [vmem:[#allocation5 + $0x20] sm:$0xf]
    %v131 = vld [vmem:[#allocation5 + $0x24] sm:$0xf]
    %v132 = vld [vmem:[#allocation5 + $0x28] sm:$0xf]
    %v133 = vld [vmem:[#allocation5 + $0x2c] sm:$0xf]
    %v134 = vld [vmem:[#allocation5 + $0x30] sm:$0xf]
    %v135 = vld [vmem:[#allocation5 + $0x34] sm:$0xf]
    %v136 = vld [vmem:[#allocation5 + $0x38] sm:$0xf]
    %v137 = vld [vmem:[#allocation5 + $0x3c] sm:$0xf]
    %v138 = vld [vmem:[%s4] sm:$0x1]
    %v140 = vlaneseq
    %v141 = vshrl.u32 %v140, 7
    %v142 = vsub.s32 0, %v141
    %v143 = vrot.slane %v138, %v142
    %v161 = vunpack.c.l.b16 %v122
    %v162 = vunpack.c.l.b16 %v123
    %v163 = vunpack.c.l.b16 %v124
    %v164 = vunpack.c.l.b16 %v125
    %v165 = vunpack.c.l.b16 %v126
    %v166 = vunpack.c.l.b16 %v127
    %v167 = vunpack.c.l.b16 %v128
    %v168 = vunpack.c.l.b16 %v129
    %v169 = vunpack.c.l.b16 %v130
    %v170 = vunpack.c.l.b16 %v131
    %v171 = vunpack.c.l.b16 %v132
    %v172 = vunpack.c.l.b16 %v133
    %v173 = vunpack.c.l.b16 %v134
    %v174 = vunpack.c.l.b16 %v135
    %v175 = vunpack.c.l.b16 %v136
    %v176 = vunpack.c.l.b16 %v137
    %v177 = vpack.c.b16 %v162, %v161
    %v178 = vpack.c.b16 %v164, %v163
    %v179 = vpack.c.b16 %v166, %v165
    %v180 = vpack.c.b16 %v168, %v167
    %v181 = vpack.c.b16 %v170, %v169
    %v182 = vpack.c.b16 %v172, %v171
    %v183 = vpack.c.b16 %v174, %v173
    %v184 = vpack.c.b16 %v176, %v175
    %193 = vmatprep.subr.bf16.mxu0 0
    %194 = vmatpush1.bf16.msra.mxu0 %v177
    %195 = vmatprep.subr.bf16.mxu0 0
    %196 = vmatpush1.bf16.msra.mxu0 %v178
    %197 = vmatprep.subr.bf16.mxu0 0
    %198 = vmatpush1.bf16.msra.mxu0 %v179
    %199 = vmatprep.subr.bf16.mxu0 0
    %200 = vmatpush1.bf16.msra.mxu0 %v180
    %201 = vmatprep.subr.bf16.mxu0 0
    %202 = vmatpush1.bf16.msra.mxu0 %v181
    %203 = vmatprep.subr.bf16.mxu0 0
    %204 = vmatpush1.bf16.msra.mxu0 %v182
    %205 = vmatprep.subr.bf16.mxu0 0
    %206 = vmatpush1.bf16.msra.mxu0 %v183
    %207 = vmatprep.subr.bf16.mxu0 0
    %208 = vmatpush1.bf16.msra.mxu0 %v184
    %209 = vmatprep.subr.bf16.mxu0 0
    %210 = vmatpush1.bf16.msra.mxu0 0
    %211 = vmatprep.subr.bf16.mxu0 0
    %212 = vmatpush1.bf16.msra.mxu0 0
    %213 = vmatprep.subr.bf16.mxu0 0
    %214 = vmatpush1.bf16.msra.mxu0 0
    %215 = vmatprep.subr.bf16.mxu0 0
    %216 = vmatpush1.bf16.msra.mxu0 0
    %217 = vmatprep.subr.bf16.mxu0 0
    %218 = vmatpush1.bf16.msra.mxu0 0
    %219 = vmatprep.subr.bf16.mxu0 0
    %220 = vmatpush1.bf16.msra.mxu0 0
    %221 = vmatprep.subr.bf16.mxu0 0
    %222 = vmatpush1.bf16.msra.mxu0 0
    %223 = vmatprep.subr.bf16.mxu0 0
    %224 = vmatpush1.bf16.msra.mxu0 0
    %225 = vmatprep.mubr.bf16.mxu0 0
    %226 = vmatmul.mubr.bf16.gmra.mrb[0].mxu0 %v121
    %v227 = vpop.f32.mrb[0].mxu0
    %v228 = vadd.f32 %v143, %v227
    %v229 = vpop.f32.mrb[0].mxu0
    %v230 = vpop.f32.mrb[0].mxu0
    %v231 = vpop.f32.mrb[0].mxu0
    %232 = vdwg.mxu0
    %v233 = vmul.f32 %v228, 0.01
    %v234 = vmax.f32 %v228, %v233
    %v235 = vpack.c.bf16 %v234, %v234
    %236 = vst [vmem:[#allocation7] sm:$0x1] %v235
    // Predicated region
    $region30: #{mapper_forward.1} parent=1 // pred_check
      _
    $region31: #{mapper_forward.1} parent=1 // pred_check_branch
      %238 = sbr.rel (0) target = $region33
    $region32: #{mapper_forward.1} parent=1 // pred_region
      %s240 = ssub.s32 16, 16
      %241 = vsyncadd [#allocation4], %s240
      %s243 = sshll.u32 [#allocation7], 4
      %s244 = int_to_ptr.vmem [resolvable:$true] %s243
      %246 = dma.vmem_to_hbm [thread:$0]  %s244, 16, %s5, [#allocation4]
    $region33: #{mapper_forward.1} parent=1 // pred_fallthru
      _
    // Predicated region
    $region34: #{mapper_forward.1} parent=1 // pred_check
      _
    $region35: #{mapper_forward.1} parent=1 // pred_check_branch
      %248 = sbr.rel (0) target = $region37
    $region36: #{mapper_forward.1} parent=1 // pred_region
      %249 = dma.done [#allocation4], 16
    $region37: #{mapper_forward.1} parent=1 // pred_fallthru
      _
    %250 = vsyncpa [#allocation3], 1
    %251 = vsyncpa [#allocation6], 1
    %252 = vsyncpa [#allocation4], 1

</llo_original>
